<compile_context>
chip_gen: v7x
topology: tpu7x:2x2x1
jax: 0.10.0
libtpu: 0.0.40
codegen_flags: <defaults>
</compile_context>

<pallas_src>
import math

import jax
import jax.numpy as jnp
from jax.experimental import pallas as pl
from jax.experimental.pallas import tpu as pltpu

_BN_EPS = 1e-5  # torch.nn.BatchNorm1d default


# ----------------------------- fused Pallas kernel ---------------------------

def _make_fused_mlp_kernel(num_blocks, output_layer):
    """Builds kernel: h = relu(h @ w_i + b_i) for each block, then optional 1-wide head."""

    def kernel(*refs):
        # refs layout:
        #   x_ref,
        #   (w_ref, b_ref) * num_blocks,          BN already folded into w/b
        #   [w_out_row_ref, b_out_ref]            only if output_layer
        #   o_ref
        x_ref = refs[0]
        o_ref = refs[-1]

        h = x_ref[...]
        idx = 1
        for _ in range(num_blocks):
            w_ref, b_ref = refs[idx], refs[idx + 1]
            idx += 2
            # MXU matmul with f32 accumulation, then bias + ReLU on the VPU.
            h = jnp.dot(h, w_ref[...], preferred_element_type=jnp.float32) + b_ref[...]
            h = jnp.maximum(h, 0.0)  # ReLU (Dropout is identity in eval mode)

        if output_layer:
            w_out_ref, b_out_ref = refs[idx], refs[idx + 1]
            # out_dim == 1: VPU multiply + XLU lane-reduction; avoids a lane-sparse
            # (N=1) MXU matmul and keeps the only masked store to the tiny output.
            y = jnp.sum(h * w_out_ref[...], axis=-1, keepdims=True) + b_out_ref[...]
            o_ref[...] = y.astype(o_ref.dtype)
        else:
            o_ref[...] = h.astype(o_ref.dtype)

    return kernel


# ----------------------------- wrapper ---------------------------------------

def fold_bn_into_linear(params):
    """One-time constant fold: returns flat list [w1,b1, w2,b2, ..., (w_out_row, b_out)]."""
    flat = []
    for p in params["blocks"]:
        scale = p["gamma"] * jax.lax.rsqrt(p["running_var"] + _BN_EPS)   # (1, out)
        w_eff = p["w_t"] * scale                                         # (in, out) * (1, out)
        b_eff = (p["b"] - p["running_mean"]) * scale + p["beta"]         # (1, out)
        flat += [w_eff, b_eff]
    if params["out"] is not None:
        flat += [params["out"]["w_row"], params["out"]["b"]]             # (1, in), (1, 1)
    return flat


def mlp_forward(params, x, *, batch_tile=512):
    """Fused eval-mode MLP forward as a single pallas_call."""
    num_blocks = len(params["blocks"])
    output_layer = params["out"] is not None
    folded = fold_bn_into_linear(params)

    B, in_dim = x.shape
    out_dim = 1 if output_layer else params["blocks"][-1]["w_t"].shape[1]

    # Sublane-aligned batch tile: multiple of 8, capped at batch_tile.
    bt = min(batch_tile, 8 * pl.cdiv(B, 8))
    pad = (-B) % bt
    if pad:
        x = jnp.pad(x, ((0, pad), (0, 0)))
    Bp = B + pad
    grid = (Bp // bt,)

    kernel = _make_fused_mlp_kernel(num_blocks, output_layer)

    def resident(shape):
        # Weights / biases: fixed block index (0, ...) -> DMA'd once, stay
        # VMEM-resident across all batch tiles (no re-DMA per grid step).
        return pl.BlockSpec(shape, lambda i, _nd=len(shape): (0,) * _nd)

    in_specs = [pl.BlockSpec((bt, in_dim), lambda i: (i, 0))]
    in_specs += [resident(a.shape) for a in folded]

    out = pl.pallas_call(
        kernel,
        out_shape=jax.ShapeDtypeStruct((Bp, out_dim), jnp.float32),
        grid=grid,
        in_specs=in_specs,
        out_specs=pl.BlockSpec((bt, out_dim), lambda i: (i, 0)),
        compiler_params=pltpu.CompilerParams(
            dimension_semantics=("parallel",)),   # v7x: shard batch tiles across 2 TCs
    )(x, *folded)

    return out[:B] if pad else out


# ----------------------------- parameter init --------------------------------

def _xavier_uniform(key, out_dim, in_dim):
    bound = math.sqrt(6.0 / (in_dim + out_dim))
    # PyTorch Linear.weight is (out, in); we store transposed (in, out) for the kernel.
    w = jax.random.uniform(key, (out_dim, in_dim), jnp.float32, -bound, bound)
    return jnp.transpose(w)


def _linear_bias(key, out_dim, in_dim):
    bound = 1.0 / math.sqrt(in_dim)
    return jax.random.uniform(key, (1, out_dim), jnp.float32, -bound, bound)


def init_mlp_params(key, input_dim, embed_dims, output_layer):
    params = {"blocks": [], "out": None}
    in_dim = input_dim
    for embed_dim in embed_dims:
        key, kw, kb = jax.random.split(key, 3)
        params["blocks"].append(dict(
            w_t=_xavier_uniform(kw, embed_dim, in_dim),          # (in, out)
            b=_linear_bias(kb, embed_dim, in_dim),                # (1, out)
            gamma=jnp.ones((1, embed_dim), jnp.float32),
            beta=jnp.zeros((1, embed_dim), jnp.float32),
            running_mean=jnp.zeros((1, embed_dim), jnp.float32),
            running_var=jnp.ones((1, embed_dim), jnp.float32),
        ))
        in_dim = embed_dim
    if output_layer:
        key, kw, kb = jax.random.split(key, 3)
        params["out"] = dict(
            w_row=jnp.transpose(_xavier_uniform(kw, 1, in_dim)),  # (1, in) row vector
            b=_linear_bias(kb, 1, in_dim),                        # (1, 1)
        )
    return params


# ----------------------------- reference (plain JAX, unfused BN) -------------

def mlp_forward_ref(params, x):
    h = x
    for p in params["blocks"]:
        h = h @ p["w_t"] + p["b"]
        h = (h - p["running_mean"]) * jax.lax.rsqrt(p["running_var"] + _BN_EPS)
        h = h * p["gamma"] + p["beta"]
        h = jnp.maximum(h, 0.0)
    if params["out"] is not None:
        h = h @ jnp.transpose(params["out"]["w_row"]) + params["out"]["b"]
    return h


# ----------------------------- main -------------------------------------------

if __name__ == "__main__":
    key = jax.random.PRNGKey(0)
    k_x, k_p = jax.random.split(key)

    batch = 8
    input_dim = 32            # num_fields * embed_dim
    embed_dims = (64, 32)
    output_layer = True

    x = jax.random.normal(k_x, (batch, input_dim), jnp.float32)
    params = init_mlp_params(k_p, input_dim, embed_dims, output_layer)

    # jit so the BN fold is constant-folded and the single pallas_call is compiled once.
    fwd = jax.jit(mlp_forward)
    out = fwd(params, x)
    out = jax.block_until_ready(out)

    ref = mlp_forward_ref(params, x)
    assert out.shape == (batch, 1), out.shape
    assert jnp.allclose(out, ref, atol=1e-4, rtol=1e-4), "mismatch vs reference"

    print("KERNEL_OK")
</pallas_src>

<mosaic_0001>
module attributes {stable_mosaic.version = 11 : i64} {
  func.func @kernel(%arg0: i32, %arg1: memref<8x32xf32, #tpu.memory_space<vmem>>, %arg2: memref<32x64xf32, #tpu.memory_space<vmem>>, %arg3: memref<1x64xf32, #tpu.memory_space<vmem>>, %arg4: memref<64x32xf32, #tpu.memory_space<vmem>>, %arg5: memref<1x32xf32, #tpu.memory_space<vmem>>, %arg6: memref<1x32xf32, #tpu.memory_space<vmem>>, %arg7: memref<1x1xf32, #tpu.memory_space<vmem>>, %arg8: memref<8x1xf32, #tpu.memory_space<vmem>>) attributes {dimension_semantics = [#tpu.dimension_semantics<parallel>], iteration_bounds = array<i64: 1>, scalar_prefetch = 0 : i64, scratch_operands = 0 : i64, tpu.core_type = #tpu.core_type<tc>, window_params = [{transform_indices = @transform_0, window_bounds = array<i64: 8, 32>}, {pipeline_mode = #tpu.pipeline_mode<synchronous>, transform_indices = @transform_1, window_bounds = array<i64: 32, 64>}, {pipeline_mode = #tpu.pipeline_mode<synchronous>, transform_indices = @transform_2, window_bounds = array<i64: 1, 64>}, {pipeline_mode = #tpu.pipeline_mode<synchronous>, transform_indices = @transform_3, window_bounds = array<i64: 64, 32>}, {pipeline_mode = #tpu.pipeline_mode<synchronous>, transform_indices = @transform_4, window_bounds = array<i64: 1, 32>}, {pipeline_mode = #tpu.pipeline_mode<synchronous>, transform_indices = @transform_5, window_bounds = array<i64: 1, 32>}, {pipeline_mode = #tpu.pipeline_mode<synchronous>, transform_indices = @transform_6, window_bounds = array<i64: 1, 1>}, {transform_indices = @transform_7, window_bounds = array<i64: 8, 1>}]} {
    %c0 = arith.constant 0 : index
    %c0_0 = arith.constant 0 : index
    %0 = vector.load %arg1[%c0, %c0_0] : memref<8x32xf32, #tpu.memory_space<vmem>>, vector<8x32xf32>
    %c0_1 = arith.constant 0 : index
    %c0_2 = arith.constant 0 : index
    %1 = vector.load %arg2[%c0_1, %c0_2] : memref<32x64xf32, #tpu.memory_space<vmem>>, vector<32x64xf32>
    %cst = arith.constant dense<0.000000e+00> : vector<8x64xf32>
    %2 = tpu.matmul %0, %1, %cst {dimension_numbers = #tpu.dot_dimension_numbers<[1], [0], [0], [1], [0, 0, 1, 1], [], []>} : vector<8x32xf32>, vector<32x64xf32>, vector<8x64xf32> -> vector<8x64xf32>
    %c0_3 = arith.constant 0 : index
    %c0_4 = arith.constant 0 : index
    %3 = vector.load %arg3[%c0_3, %c0_4] : memref<1x64xf32, #tpu.memory_space<vmem>>, vector<1x64xf32>
    %4 = vector.broadcast %3 : vector<1x64xf32> to vector<8x64xf32>
    %5 = arith.addf %2, %4 : vector<8x64xf32>
    %cst_5 = arith.constant 0.000000e+00 : f32
    %6 = vector.broadcast %cst_5 : f32 to vector<8x64xf32>
    %7 = arith.maximumf %5, %6 : vector<8x64xf32>
    %c0_6 = arith.constant 0 : index
    %c0_7 = arith.constant 0 : index
    %8 = vector.load %arg4[%c0_6, %c0_7] : memref<64x32xf32, #tpu.memory_space<vmem>>, vector<64x32xf32>
    %cst_8 = arith.constant dense<0.000000e+00> : vector<8x32xf32>
    %9 = tpu.matmul %7, %8, %cst_8 {dimension_numbers = #tpu.dot_dimension_numbers<[1], [0], [0], [1], [0, 0, 1, 1], [], []>} : vector<8x64xf32>, vector<64x32xf32>, vector<8x32xf32> -> vector<8x32xf32>
    %c0_9 = arith.constant 0 : index
    %c0_10 = arith.constant 0 : index
    %10 = vector.load %arg5[%c0_9, %c0_10] : memref<1x32xf32, #tpu.memory_space<vmem>>, vector<1x32xf32>
    %11 = vector.broadcast %10 : vector<1x32xf32> to vector<8x32xf32>
    %12 = arith.addf %9, %11 : vector<8x32xf32>
    %cst_11 = arith.constant 0.000000e+00 : f32
    %13 = vector.broadcast %cst_11 : f32 to vector<8x32xf32>
    %14 = arith.maximumf %12, %13 : vector<8x32xf32>
    %c0_12 = arith.constant 0 : index
    %c0_13 = arith.constant 0 : index
    %15 = vector.load %arg6[%c0_12, %c0_13] : memref<1x32xf32, #tpu.memory_space<vmem>>, vector<1x32xf32>
    %16 = vector.broadcast %15 : vector<1x32xf32> to vector<8x32xf32>
    %17 = arith.mulf %14, %16 : vector<8x32xf32>
    %cst_14 = arith.constant dense<0.000000e+00> : vector<8xf32>
    %18 = vector.multi_reduction <add>, %17, %cst_14 [1] : vector<8x32xf32> to vector<8xf32>
    %19 = vector.shape_cast %18 : vector<8xf32> to vector<8x1xf32>
    %c0_15 = arith.constant 0 : index
    %c0_16 = arith.constant 0 : index
    %20 = vector.load %arg7[%c0_15, %c0_16] : memref<1x1xf32, #tpu.memory_space<vmem>>, vector<1x1xf32>
    %21 = vector.broadcast %20 : vector<1x1xf32> to vector<8x1xf32>
    %22 = arith.addf %19, %21 : vector<8x1xf32>
    %c0_17 = arith.constant 0 : index
    %c0_18 = arith.constant 0 : index
    %23 = vector.load %arg8[%c0_17, %c0_18] : memref<8x1xf32, #tpu.memory_space<vmem>>, vector<8x1xf32>
    tpu.vector_store %arg8[%c0_17, %c0_18], %22 {strides = array<i32>} : memref<8x1xf32, #tpu.memory_space<vmem>>, vector<8x1xf32>,
    return
  }
  func.func @transform_0(%arg0: i32) -> (i32, i32) {
    %c0_i32 = arith.constant 0 : i32
    %c0_i32_0 = arith.constant 0 : i32
    return %arg0, %c0_i32 : i32, i32
  }
  func.func @transform_1(%arg0: i32) -> (i32, i32) {
    %c0_i32 = arith.constant 0 : i32
    %c0_i32_0 = arith.constant 0 : i32
    %c0_i32_1 = arith.constant 0 : i32
    return %c0_i32, %c0_i32_0 : i32, i32
  }
  func.func @transform_2(%arg0: i32) -> (i32, i32) {
    %c0_i32 = arith.constant 0 : i32
    %c0_i32_0 = arith.constant 0 : i32
    %c0_i32_1 = arith.constant 0 : i32
    return %c0_i32, %c0_i32_0 : i32, i32
  }
  func.func @transform_3(%arg0: i32) -> (i32, i32) {
    %c0_i32 = arith.constant 0 : i32
    %c0_i32_0 = arith.constant 0 : i32
    %c0_i32_1 = arith.constant 0 : i32
    return %c0_i32, %c0_i32_0 : i32, i32
  }
  func.func @transform_4(%arg0: i32) -> (i32, i32) {
    %c0_i32 = arith.constant 0 : i32
    %c0_i32_0 = arith.constant 0 : i32
    %c0_i32_1 = arith.constant 0 : i32
    return %c0_i32, %c0_i32_0 : i32, i32
  }
  func.func @transform_5(%arg0: i32) -> (i32, i32) {
    %c0_i32 = arith.constant 0 : i32
    %c0_i32_0 = arith.constant 0 : i32
    %c0_i32_1 = arith.constant 0 : i32
    return %c0_i32, %c0_i32_0 : i32, i32
  }
  func.func @transform_6(%arg0: i32) -> (i32, i32) {
    %c0_i32 = arith.constant 0 : i32
    %c0_i32_0 = arith.constant 0 : i32
    %c0_i32_1 = arith.constant 0 : i32
    return %c0_i32, %c0_i32_0 : i32, i32
  }
  func.func @transform_7(%arg0: i32) -> (i32, i32) {
    %c0_i32 = arith.constant 0 : i32
    %c0_i32_0 = arith.constant 0 : i32
    return %arg0, %c0_i32 : i32, i32
  }
}

</mosaic_0001>

<llo_original>
// kernel: mlp_forward.1
$region0: #{mlp_forward.1}
  #allocation0 [shape = 'u32[]', space=smem, size = 0x4, offset = 0x4, fixed_abs, tag = 'smem constant byte address 0x4 - core index']
  #allocation1 [shape = 'u32[144,128]{1,0:T(1,128)}', space=vmem, size = 0x12000, scoped, tag = 'internal scratch']
  #allocation2 [shape = 'f32[1,1]{1,0:T(1,128)S(1)}', space=vmem, size = 0x200, scoped, tag = 'scoped memory for mlp_forward.1']
  %s0 = inlined_call_operand.vmem [shape: f32[8,32], index: 0, kind: input, shape index: {}]
  %s1 = inlined_call_operand.vmem [shape: f32[32,64], index: 1, kind: input, shape index: {}]
  %s2 = inlined_call_operand.vmem [shape: f32[1,64], index: 2, kind: input, shape index: {}]
  %s3 = inlined_call_operand.vmem [shape: f32[64,32], index: 3, kind: input, shape index: {}]
  %s4 = inlined_call_operand.vmem [shape: f32[1,32], index: 4, kind: input, shape index: {}]
  %s5 = inlined_call_operand.vmem [shape: f32[1,32], index: 5, kind: input, shape index: {}]
  %s6 = inlined_call_operand.<no memory space> [shape: f32[1,1], index: 6, kind: input, shape index: {}]
  %s7 = inlined_call_operand.vmem [shape: f32[8,1], index: 7, kind: output, shape index: {}]
  %s8 = sld [smem:[#allocation0]]
  $region38: #{mlp_forward.1} parent=0
    _
  %s10 = ssub.s32 1, %s8
  %s11 = scalar_select 0, %s10, %s8
  %v12 = vstv %s6
  %13 = vst [vmem:[#allocation2] sm:$0x1] %v12
  // Predicated region
  $region2: #{mlp_forward.1} parent=0 // pred_check
    _
  $region3: #{mlp_forward.1} parent=0 // pred_check_branch
    %15 = sbr.rel (0) target = $region5
  $region4: #{mlp_forward.1} parent=0 // pred_region
    _
  $region5: #{mlp_forward.1} parent=0 // pred_fallthru
    _
  // Predicated region
  $region6: #{mlp_forward.1} parent=0 // pred_check
    _
  $region7: #{mlp_forward.1} parent=0 // pred_check_branch
    %17 = sbr.rel (0) target = $region9
  $region8: #{mlp_forward.1} parent=0 // pred_region
    _
  $region9: #{mlp_forward.1} parent=0 // pred_fallthru
    _
  // Predicated region
  $region10: #{mlp_forward.1} parent=0 // pred_check
    _
  $region11: #{mlp_forward.1} parent=0 // pred_check_branch
    %19 = sbr.rel (0) target = $region13
  $region12: #{mlp_forward.1} parent=0 // pred_region
    _
  $region13: #{mlp_forward.1} parent=0 // pred_fallthru
    _
  // Predicated region
  $region14: #{mlp_forward.1} parent=0 // pred_check
    _
  $region15: #{mlp_forward.1} parent=0 // pred_check_branch
    %21 = sbr.rel (0) target = $region17
  $region16: #{mlp_forward.1} parent=0 // pred_region
    _
  $region17: #{mlp_forward.1} parent=0 // pred_fallthru
    _
  // Predicated region
  $region18: #{mlp_forward.1} parent=0 // pred_check
    _
  $region19: #{mlp_forward.1} parent=0 // pred_check_branch
    %23 = sbr.rel (0) target = $region21
  $region20: #{mlp_forward.1} parent=0 // pred_region
    _
  $region21: #{mlp_forward.1} parent=0 // pred_fallthru
    _
  // Predicated region
  $region22: #{mlp_forward.1} parent=0 // pred_check
    _
  $region23: #{mlp_forward.1} parent=0 // pred_check_branch
    %25 = sbr.rel (0) target = $region25
  $region24: #{mlp_forward.1} parent=0 // pred_region
    _
  $region25: #{mlp_forward.1} parent=0 // pred_fallthru
    _
  // Predicated region
  $region26: #{mlp_forward.1} parent=0 // pred_check
    _
  $region27: #{mlp_forward.1} parent=0 // pred_check_branch
    %27 = sbr.rel (0) target = $region29
  $region28: #{mlp_forward.1} parent=0 // pred_region
    _
  $region29: #{mlp_forward.1} parent=0 // pred_fallthru
    _
  %v28 = vld [vmem:[%s0] sm:$0xff]
  %v29 = vld [vmem:[%s1] sm:$0xff]
  %v30 = vld [vmem:[%s1 + $0x8] sm:$0xff]
  %v31 = vld [vmem:[%s1 + $0x10] sm:$0xff]
  %v32 = vld [vmem:[%s1 + $0x18] sm:$0xff]
  %v33 = vld [vmem:[%s2] sm:$0x1]
  %v35 = vlaneseq
  %v36 = vshrl.u32 %v35, 7
  %v37 = vsub.s32 0, %v36
  %v38 = vrot.slane %v33, %v37
  %vm40 = vcmask 261120
  %v42 = vsel %vm40, %v28, 0
  %44 = vmatprep.subr.mxu0 0.0
  %45 = vmatpush1.msra.mxu0 %v29
  %46 = vmatprep.subr.mxu0 0.0
  %47 = vmatpush1.msra.mxu0 %v30
  %48 = vmatprep.subr.mxu0 0.0
  %49 = vmatpush1.msra.mxu0 %v31
  %50 = vmatprep.subr.mxu0 0.0
  %51 = vmatpush1.msra.mxu0 %v32
  %52 = vmatprep.subr.mxu0 0.0
  %53 = vmatpush1.msra.mxu0 0.0
  %54 = vmatprep.subr.mxu0 0.0
  %55 = vmatpush1.msra.mxu0 0.0
  %56 = vmatprep.subr.mxu0 0.0
  %57 = vmatpush1.msra.mxu0 0.0
  %58 = vmatprep.subr.mxu0 0.0
  %59 = vmatpush1.msra.mxu0 0.0
  %60 = vmatprep.subr.mxu0 0.0
  %61 = vmatpush1.msra.mxu0 0.0
  %62 = vmatprep.subr.mxu0 0.0
  %63 = vmatpush1.msra.mxu0 0.0
  %64 = vmatprep.subr.mxu0 0.0
  %65 = vmatpush1.msra.mxu0 0.0
  %66 = vmatprep.subr.mxu0 0.0
  %67 = vmatpush1.msra.mxu0 0.0
  %68 = vmatprep.subr.mxu0 0.0
  %69 = vmatpush1.msra.mxu0 0.0
  %70 = vmatprep.subr.mxu0 0.0
  %71 = vmatpush1.msra.mxu0 0.0
  %72 = vmatprep.subr.mxu0 0.0
  %73 = vmatpush1.msra.mxu0 0.0
  %74 = vmatprep.subr.mxu0 0.0
  %75 = vmatpush1.msra.mxu0 0.0
  %76 = vmatprep.subr.mxu0 0.0
  %77 = vmatpush1.msra.mxu0 0.0
  %78 = vmatprep.subr.mxu0 0.0
  %79 = vmatpush1.msra.mxu0 0.0
  %80 = vmatprep.subr.mxu0 0.0
  %81 = vmatpush1.msra.mxu0 0.0
  %82 = vmatprep.subr.mxu0 0.0
  %83 = vmatpush1.msra.mxu0 0.0
  %84 = vmatprep.subr.mxu0 0.0
  %85 = vmatpush1.msra.mxu0 0.0
  %86 = vmatprep.subr.mxu0 0.0
  %87 = vmatpush1.msra.mxu0 0.0
  %88 = vmatprep.subr.mxu0 0.0
  %89 = vmatpush1.msra.mxu0 0.0
  %90 = vmatprep.subr.mxu0 0.0
  %91 = vmatpush1.msra.mxu0 0.0
  %92 = vmatprep.subr.mxu0 0.0
  %93 = vmatpush1.msra.mxu0 0.0
  %94 = vmatprep.subr.mxu0 0.0
  %95 = vmatpush1.msra.mxu0 0.0
  %96 = vmatprep.subr.mxu0 0.0
  %97 = vmatpush1.msra.mxu0 0.0
  %98 = vmatprep.subr.mxu0 0.0
  %99 = vmatpush1.msra.mxu0 0.0
  %100 = vmatprep.subr.mxu0 0.0
  %101 = vmatpush1.msra.mxu0 0.0
  %102 = vmatprep.subr.mxu0 0.0
  %103 = vmatpush1.msra.mxu0 0.0
  %104 = vmatprep.subr.mxu0 0.0
  %105 = vmatpush1.msra.mxu0 0.0
  %106 = vmatprep.subr.mxu0 0.0
  %107 = vmatpush1.msra.mxu0 0.0
  %108 = vmatprep.mubr.f32.mxu0 0.0
  %109 = vmatmul.mubr.f32.gmra.mrb[0].mxu0 %v42
  %v110 = vpop.f32.mrb[0].mxu0
  %v111 = vadd.f32 %v38, %v110
  %v112 = vpop.f32.mrb[0].mxu0
  %113 = vdwg.mxu0
  %v114 = vmax.f32 %v111, 0.0
  %v115 = vld [vmem:[%s3] sm:$0xff]
  %v116 = vld [vmem:[%s3 + $0x8] sm:$0xff]
  %v117 = vld [vmem:[%s3 + $0x10] sm:$0xff]
  %v118 = vld [vmem:[%s3 + $0x18] sm:$0xff]
  %v119 = vld [vmem:[%s3 + $0x20] sm:$0xff]
  %v120 = vld [vmem:[%s3 + $0x28] sm:$0xff]
  %v121 = vld [vmem:[%s3 + $0x30] sm:$0xff]
  %v122 = vld [vmem:[%s3 + $0x38] sm:$0xff]
  %v123 = vld [vmem:[%s4] sm:$0x1]
  %v125 = vlaneseq
  %v126 = vshrl.u32 %v125, 7
  %v127 = vsub.s32 0, %v126
  %v128 = vrot.slane %v123, %v127
  %vm130 = vcmask 523264
  %v132 = vsel %vm130, %v114, 0
  %134 = vmatprep.subr.mxu0 0.0
  %135 = vmatpush1.msra.mxu0 %v115
  %136 = vmatprep.subr.mxu0 0.0
  %137 = vmatpush1.msra.mxu0 %v116
  %138 = vmatprep.subr.mxu0 0.0
  %139 = vmatpush1.msra.mxu0 %v117
  %140 = vmatprep.subr.mxu0 0.0
  %141 = vmatpush1.msra.mxu0 %v118
  %142 = vmatprep.subr.mxu0 0.0
  %143 = vmatpush1.msra.mxu0 %v119
  %144 = vmatprep.subr.mxu0 0.0
  %145 = vmatpush1.msra.mxu0 %v120
  %146 = vmatprep.subr.mxu0 0.0
  %147 = vmatpush1.msra.mxu0 %v121
  %148 = vmatprep.subr.mxu0 0.0
  %149 = vmatpush1.msra.mxu0 %v122
  %150 = vmatprep.subr.mxu0 0.0
  %151 = vmatpush1.msra.mxu0 0.0
  %152 = vmatprep.subr.mxu0 0.0
  %153 = vmatpush1.msra.mxu0 0.0
  %154 = vmatprep.subr.mxu0 0.0
  %155 = vmatpush1.msra.mxu0 0.0
  %156 = vmatprep.subr.mxu0 0.0
  %157 = vmatpush1.msra.mxu0 0.0
  %158 = vmatprep.subr.mxu0 0.0
  %159 = vmatpush1.msra.mxu0 0.0
  %160 = vmatprep.subr.mxu0 0.0
  %161 = vmatpush1.msra.mxu0 0.0
  %162 = vmatprep.subr.mxu0 0.0
  %163 = vmatpush1.msra.mxu0 0.0
  %164 = vmatprep.subr.mxu0 0.0
  %165 = vmatpush1.msra.mxu0 0.0
  %166 = vmatprep.subr.mxu0 0.0
  %167 = vmatpush1.msra.mxu0 0.0
  %168 = vmatprep.subr.mxu0 0.0
  %169 = vmatpush1.msra.mxu0 0.0
  %170 = vmatprep.subr.mxu0 0.0
  %171 = vmatpush1.msra.mxu0 0.0
  %172 = vmatprep.subr.mxu0 0.0
  %173 = vmatpush1.msra.mxu0 0.0
  %174 = vmatprep.subr.mxu0 0.0
  %175 = vmatpush1.msra.mxu0 0.0
  %176 = vmatprep.subr.mxu0 0.0
  %177 = vmatpush1.msra.mxu0 0.0
  %178 = vmatprep.subr.mxu0 0.0
  %179 = vmatpush1.msra.mxu0 0.0
  %180 = vmatprep.subr.mxu0 0.0
  %181 = vmatpush1.msra.mxu0 0.0
  %182 = vmatprep.subr.mxu0 0.0
  %183 = vmatpush1.msra.mxu0 0.0
  %184 = vmatprep.subr.mxu0 0.0
  %185 = vmatpush1.msra.mxu0 0.0
  %186 = vmatprep.subr.mxu0 0.0
  %187 = vmatpush1.msra.mxu0 0.0
  %188 = vmatprep.subr.mxu0 0.0
  %189 = vmatpush1.msra.mxu0 0.0
  %190 = vmatprep.subr.mxu0 0.0
  %191 = vmatpush1.msra.mxu0 0.0
  %192 = vmatprep.subr.mxu0 0.0
  %193 = vmatpush1.msra.mxu0 0.0
  %194 = vmatprep.subr.mxu0 0.0
  %195 = vmatpush1.msra.mxu0 0.0
  %196 = vmatprep.subr.mxu0 0.0
  %197 = vmatpush1.msra.mxu0 0.0
  %198 = vmatprep.mubr.f32.mxu0 0.0
  %199 = vmatmul.mubr.f32.gmra.mrb[0].mxu0 %v132
  %v200 = vpop.f32.mrb[0].mxu0
  %v201 = vadd.f32 %v128, %v200
  %v202 = vpop.f32.mrb[0].mxu0
  %203 = vdwg.mxu0
  %v204 = vmax.f32 %v201, 0.0
  %v205 = vld [vmem:[%s5] sm:$0x1]
  %v207 = vlaneseq
  %v208 = vshrl.u32 %v207, 7
  %v209 = vsub.s32 0, %v208
  %v210 = vrot.slane %v205, %v209
  %v212 = vmul.f32 %v204, %v210
  %v213 = vsel %vm40, %v212, 0.0
  %214 = vadd.xlane.f32.xlu0 %v213
  %v215 = vpop.xlane.xlu0 %214
  %v216 = vld [vmem:[#allocation2] sm:$0x1]
  %v218 = vlaneseq
  %v219 = vshrl.u32 %v218, 7
  %v220 = vsub.s32 0, %v219
  %v221 = vrot.slane %v216, %v220
  %v223 = vadd.f32 %v215, %v221
  %vm224 = vcmask 7168
  %225 = vst.msk [vmem:[%s7] sm:$0xff] %vm224, %v223
  // Predicated region
  $region30: #{mlp_forward.1} parent=0 // pred_check
    _
  $region31: #{mlp_forward.1} parent=0 // pred_check_branch
    %227 = sbr.rel (0) target = $region33
  $region32: #{mlp_forward.1} parent=0 // pred_region
    _
  $region33: #{mlp_forward.1} parent=0 // pred_fallthru
    _
  // Predicated region
  $region34: #{mlp_forward.1} parent=0 // pred_check
    _
  $region35: #{mlp_forward.1} parent=0 // pred_check_branch
    %229 = sbr.rel (0) target = $region37
  $region36: #{mlp_forward.1} parent=0 // pred_region
    _
  $region37: #{mlp_forward.1} parent=0 // pred_fallthru
    _

</llo_original>
